<compile_context>
chip_gen: v7x
topology: tpu7x:2x2x1
jax: 0.10.0
libtpu: 0.0.40
codegen_flags: <defaults>
</compile_context>

<pallas_src>
import jax
import jax.numpy as jnp
from jax.experimental import pallas as pl
from jax.experimental.pallas import tpu as pltpu

OUT_FEATURES = 8


def _round_up(x, m):
    return ((x + m - 1) // m) * m


def fc_change_kernel(x_ref, w1_ref, b1_ref, w2_ref, b2_ref, w3_ref, b3_ref, o_ref):
    # Whole MLP fused in one grid step; weights stay resident in VMEM.
    cdt = w1_ref.dtype                       # compute dtype for MXU operands
    x = x_ref[...].astype(cdt)               # in-kernel cast: no wrapper pass over x

    h1 = jnp.dot(x, w1_ref[...], preferred_element_type=jnp.float32) + b1_ref[...]
    h1 = jnp.maximum(h1, 0.0).astype(cdt)    # bias/ReLU in f32, downcast only for MXU

    h2 = jnp.dot(h1, w2_ref[...], preferred_element_type=jnp.float32) + b2_ref[...]
    h2 = jnp.maximum(h2, 0.0).astype(cdt)

    out = jnp.dot(h2, w3_ref[...], preferred_element_type=jnp.float32) + b3_ref[...]
    o_ref[...] = out.astype(o_ref.dtype)     # compact (tb, 8) store


def prepare_params(params, compute_dtype=jnp.float32):
    """One-time parameter prep (hoisted out of the hot path).

    Casts matmul operands to `compute_dtype`, keeps biases in f32, and
    zero-pads the hidden width to a multiple of 128 so h1/h2 are lane-dense
    and the MXU N/K dims are filled.  Zero padding is exact: padded hidden
    units see ReLU(0 + 0) = 0 and the padded w2/w3 rows are zero, so they
    contribute nothing to the result.
    """
    C = params["w1"].shape[1]
    Cp = _round_up(max(C, 128), 128)
    pad_c = Cp - C

    w1 = jnp.pad(params["w1"].astype(compute_dtype), ((0, 0), (0, pad_c)))      # (2C, Cp)
    b1 = jnp.pad(params["b1"].astype(jnp.float32), ((0, 0), (0, pad_c)))        # (1, Cp)
    w2 = jnp.pad(params["w2"].astype(compute_dtype), ((0, pad_c), (0, pad_c)))  # (Cp, Cp)
    b2 = jnp.pad(params["b2"].astype(jnp.float32), ((0, 0), (0, pad_c)))        # (1, Cp)
    w3 = jnp.pad(params["w3"].astype(compute_dtype), ((0, pad_c), (0, 0)))      # (Cp, 8)
    b3 = params["b3"].astype(jnp.float32)                                       # (1, 8)
    return {"w1": w1, "b1": b1, "w2": w2, "b2": b2, "w3": w3, "b3": b3}


def _physical_vmem_bytes():
    try:
        return int(pltpu.get_tpu_info().vmem_capacity_bytes)
    except Exception:
        return 64 << 20  # conservative fallback (v7x per-TensorCore VMEM)


def fc_change(x, prepared_params, *, tb=None, out_dtype=None,
              single_buffer_weights=False):
    """x: (..., 2*C).  prepared_params: output of prepare_params()."""
    p = prepared_params
    lead = x.shape[:-1]
    two_c = x.shape[-1]
    xr = x.reshape(-1, two_c)                 # leading-dim reshape: free
    B = xr.shape[0]

    Cp = p["w1"].shape[1]
    assert p["w1"].shape[0] == two_c, "input feature dim does not match params"
    out_dtype = x.dtype if out_dtype is None else out_dtype

    xbytes = jnp.dtype(xr.dtype).itemsize
    obytes = jnp.dtype(out_dtype).itemsize
    cbytes = jnp.dtype(p["w1"].dtype).itemsize
    weight_vmem = ((two_c * Cp + Cp * Cp + Cp * OUT_FEATURES) * cbytes
                   + (2 * Cp + OUT_FEATURES) * 4)
    w_bufs = 1 if single_buffer_weights else 2

    # ---- batch tile ---------------------------------------------------------
    if tb is None:
        if B <= 1024:
            # Single grid step: no per-step overhead on the 1-TC chips.
            tb = _round_up(max(B, 16), 16)
        else:
            # >= 8 steps: shards the batch across v7x's two TensorCores and
            # keeps the DMA pipeline full; 16-row multiple for sublane packing.
            tb = min(1024, _round_up(pl.cdiv(B, 8), 16))
    else:
        tb = _round_up(max(int(tb), 16), 16)

    # ---- VMEM accounting: 2x I/O tiles + weights + f32 intermediates --------
    def est_vmem(t):
        io = 2 * t * two_c * xbytes + 2 * t * OUT_FEATURES * obytes
        interm = 3 * t * Cp * 4                 # h1/h2 in f32 + cast temporaries
        return io + w_bufs * weight_vmem + interm

    vmem_cap = int(0.85 * _physical_vmem_bytes())   # ~54 MiB v7x, ~109 MiB v5e/v6e
    while est_vmem(tb) + (8 << 20) > vmem_cap and tb > 16:
        tb = max(16, _round_up(tb // 2, 16))

    grid = (pl.cdiv(B, tb),)   # ragged last block: OOB rows only feed discarded output rows

    # ---- advisory cost hint --------------------------------------------------
    flops = 2 * B * (two_c * Cp + Cp * Cp + Cp * OUT_FEATURES)
    bytes_accessed = B * two_c * xbytes + weight_vmem + B * OUT_FEATURES * obytes
    cost = pl.CostEstimate(flops=int(flops), transcendentals=0,
                           bytes_accessed=int(bytes_accessed))

    vmem_limit = int(min(max(est_vmem(tb) + (8 << 20), 32 << 20), vmem_cap))

    def w_spec(shape):
        # Grid-invariant operands (constant index_map => no re-DMA per step).
        # Optionally single-buffer them to halve weight VMEM for large C.
        idx = lambda i: (0,) * len(shape)
        if single_buffer_weights:
            return pl.BlockSpec(shape, idx, pipeline_mode=pl.Buffered(1))
        return pl.BlockSpec(shape, idx)

    out = pl.pallas_call(
        fc_change_kernel,
        out_shape=jax.ShapeDtypeStruct((B, OUT_FEATURES), out_dtype),
        grid_spec=pltpu.PrefetchScalarGridSpec(
            num_scalar_prefetch=0,
            grid=grid,
            in_specs=[
                pl.BlockSpec((tb, two_c), lambda i: (i, 0)),   # x tile
                w_spec((two_c, Cp)),                           # w1
                w_spec((1, Cp)),                               # b1
                w_spec((Cp, Cp)),                              # w2
                w_spec((1, Cp)),                               # b2
                w_spec((Cp, OUT_FEATURES)),                    # w3 (no zero cols)
                w_spec((1, OUT_FEATURES)),                     # b3
            ],
            # Compact output block: 16x fewer HBM writeback bytes than the old
            # 128-wide padded slab, and no wrapper-side slice afterwards.
            out_specs=pl.BlockSpec((tb, OUT_FEATURES), lambda i: (i, 0)),
        ),
        compiler_params=pltpu.CompilerParams(
            dimension_semantics=("parallel",),
            vmem_limit_bytes=vmem_limit,
        ),
        cost_estimate=cost,
    )(xr, p["w1"], p["b1"], p["w2"], p["b2"], p["w3"], p["b3"])

    return out.reshape(*lead, OUT_FEATURES)


def init_params(key, in_channels):
    """Deterministic init mimicking PyTorch nn.Linear defaults (uniform +/- 1/sqrt(fan_in));
    weights stored (in_features, out_features)."""
    C = in_channels
    ks = jax.random.split(key, 6)

    def lin(kw, kb, fan_in, fan_out):
        bound = 1.0 / jnp.sqrt(fan_in)
        w = jax.random.uniform(kw, (fan_in, fan_out), jnp.float32, -bound, bound)
        b = jax.random.uniform(kb, (1, fan_out), jnp.float32, -bound, bound)
        return w, b

    w1, b1 = lin(ks[0], ks[1], 2 * C, C)
    w2, b2 = lin(ks[2], ks[3], C, C)
    w3, b3 = lin(ks[4], ks[5], C, 8)
    return {"w1": w1, "b1": b1, "w2": w2, "b2": b2, "w3": w3, "b3": b3}


def fc_change_ref(x, p):
    h1 = jnp.maximum(x @ p["w1"] + p["b1"], 0.0)
    h2 = jnp.maximum(h1 @ p["w2"] + p["b2"], 0.0)
    return h2 @ p["w3"] + p["b3"]


if __name__ == "__main__":
    key = jax.random.PRNGKey(0)
    k_x, k_p = jax.random.split(key)

    in_channels = 32
    batch = 16
    x = jax.random.normal(k_x, (batch, 2 * in_channels), jnp.float32)
    params = init_params(k_p, in_channels)
    ref = fc_change_ref(x, params)

    # Default path: f32 compute, matching the PyTorch module's numerics.
    prepared_f32 = prepare_params(params, compute_dtype=jnp.float32)
    out = jax.block_until_ready(fc_change(x, prepared_f32))
    assert out.shape == (batch, OUT_FEATURES)
    assert jnp.allclose(out, ref, atol=1e-5, rtol=1e-5), "f32 kernel mismatch vs reference"

    # Explicit bf16 opt-in (halves MXU-operand bytes): loose tolerance vs f32 ref.
    prepared_bf16 = prepare_params(params, compute_dtype=jnp.bfloat16)
    out_bf16 = jax.block_until_ready(fc_change(x, prepared_bf16))
    assert out_bf16.shape == (batch, OUT_FEATURES)
    assert jnp.allclose(out_bf16, ref, atol=5e-2, rtol=5e-2), "bf16 kernel mismatch vs reference"

    print("KERNEL_OK")
</pallas_src>

<mosaic_0001>
module attributes {stable_mosaic.version = 11 : i64} {
  func.func @fc_change_kernel(%arg0: i32, %arg1: memref<16x64xf32, #tpu.memory_space<vmem>>, %arg2: memref<64x128xf32, #tpu.memory_space<vmem>>, %arg3: memref<1x128xf32, #tpu.memory_space<vmem>>, %arg4: memref<128x128xf32, #tpu.memory_space<vmem>>, %arg5: memref<1x128xf32, #tpu.memory_space<vmem>>, %arg6: memref<128x8xf32, #tpu.memory_space<vmem>>, %arg7: memref<1x8xf32, #tpu.memory_space<vmem>>, %arg8: memref<16x8xf32, #tpu.memory_space<vmem>>) attributes {dimension_semantics = [#tpu.dimension_semantics<parallel>], iteration_bounds = array<i64: 1>, scalar_prefetch = 0 : i64, scratch_operands = 0 : i64, tpu.core_type = #tpu.core_type<tc>, window_params = [{transform_indices = @transform_0, window_bounds = array<i64: 16, 64>}, {pipeline_mode = #tpu.pipeline_mode<synchronous>, transform_indices = @transform_1, window_bounds = array<i64: 64, 128>}, {pipeline_mode = #tpu.pipeline_mode<synchronous>, transform_indices = @transform_2, window_bounds = array<i64: 1, 128>}, {pipeline_mode = #tpu.pipeline_mode<synchronous>, transform_indices = @transform_3, window_bounds = array<i64: 128, 128>}, {pipeline_mode = #tpu.pipeline_mode<synchronous>, transform_indices = @transform_4, window_bounds = array<i64: 1, 128>}, {pipeline_mode = #tpu.pipeline_mode<synchronous>, transform_indices = @transform_5, window_bounds = array<i64: 128, 8>}, {pipeline_mode = #tpu.pipeline_mode<synchronous>, transform_indices = @transform_6, window_bounds = array<i64: 1, 8>}, {transform_indices = @transform_7, window_bounds = array<i64: 16, 8>}]} {
    %c0 = arith.constant 0 : index
    %c0_0 = arith.constant 0 : index
    %0 = vector.load %arg1[%c0, %c0_0] : memref<16x64xf32, #tpu.memory_space<vmem>>, vector<16x64xf32>
    %c0_1 = arith.constant 0 : index
    %c0_2 = arith.constant 0 : index
    %1 = vector.load %arg2[%c0_1, %c0_2] : memref<64x128xf32, #tpu.memory_space<vmem>>, vector<64x128xf32>
    %cst = arith.constant dense<0.000000e+00> : vector<16x128xf32>
    %2 = tpu.matmul %0, %1, %cst {dimension_numbers = #tpu.dot_dimension_numbers<[1], [0], [0], [1], [0, 0, 1, 1], [], []>} : vector<16x64xf32>, vector<64x128xf32>, vector<16x128xf32> -> vector<16x128xf32>
    %c0_3 = arith.constant 0 : index
    %c0_4 = arith.constant 0 : index
    %3 = vector.load %arg3[%c0_3, %c0_4] : memref<1x128xf32, #tpu.memory_space<vmem>>, vector<1x128xf32>
    %4 = vector.broadcast %3 : vector<1x128xf32> to vector<16x128xf32>
    %5 = arith.addf %2, %4 : vector<16x128xf32>
    %cst_5 = arith.constant 0.000000e+00 : f32
    %6 = vector.broadcast %cst_5 : f32 to vector<16x128xf32>
    %7 = arith.maximumf %5, %6 : vector<16x128xf32>
    %c0_6 = arith.constant 0 : index
    %c0_7 = arith.constant 0 : index
    %8 = vector.load %arg4[%c0_6, %c0_7] : memref<128x128xf32, #tpu.memory_space<vmem>>, vector<128x128xf32>
    %cst_8 = arith.constant dense<0.000000e+00> : vector<16x128xf32>
    %9 = tpu.matmul %7, %8, %cst_8 {dimension_numbers = #tpu.dot_dimension_numbers<[1], [0], [0], [1], [0, 0, 1, 1], [], []>} : vector<16x128xf32>, vector<128x128xf32>, vector<16x128xf32> -> vector<16x128xf32>
    %c0_9 = arith.constant 0 : index
    %c0_10 = arith.constant 0 : index
    %10 = vector.load %arg5[%c0_9, %c0_10] : memref<1x128xf32, #tpu.memory_space<vmem>>, vector<1x128xf32>
    %11 = vector.broadcast %10 : vector<1x128xf32> to vector<16x128xf32>
    %12 = arith.addf %9, %11 : vector<16x128xf32>
    %cst_11 = arith.constant 0.000000e+00 : f32
    %13 = vector.broadcast %cst_11 : f32 to vector<16x128xf32>
    %14 = arith.maximumf %12, %13 : vector<16x128xf32>
    %c0_12 = arith.constant 0 : index
    %c0_13 = arith.constant 0 : index
    %15 = vector.load %arg6[%c0_12, %c0_13] : memref<128x8xf32, #tpu.memory_space<vmem>>, vector<128x8xf32>
    %cst_14 = arith.constant dense<0.000000e+00> : vector<16x8xf32>
    %16 = tpu.matmul %14, %15, %cst_14 {dimension_numbers = #tpu.dot_dimension_numbers<[1], [0], [0], [1], [0, 0, 1, 1], [], []>} : vector<16x128xf32>, vector<128x8xf32>, vector<16x8xf32> -> vector<16x8xf32>
    %c0_15 = arith.constant 0 : index
    %c0_16 = arith.constant 0 : index
    %17 = vector.load %arg7[%c0_15, %c0_16] : memref<1x8xf32, #tpu.memory_space<vmem>>, vector<1x8xf32>
    %18 = vector.broadcast %17 : vector<1x8xf32> to vector<16x8xf32>
    %19 = arith.addf %16, %18 : vector<16x8xf32>
    %c0_17 = arith.constant 0 : index
    %c0_18 = arith.constant 0 : index
    %20 = vector.load %arg8[%c0_17, %c0_18] : memref<16x8xf32, #tpu.memory_space<vmem>>, vector<16x8xf32>
    tpu.vector_store %arg8[%c0_17, %c0_18], %19 {strides = array<i32>} : memref<16x8xf32, #tpu.memory_space<vmem>>, vector<16x8xf32>,
    return
  }
  func.func @transform_0(%arg0: i32) -> (i32, i32) {
    %c0_i32 = arith.constant 0 : i32
    %c0_i32_0 = arith.constant 0 : i32
    return %arg0, %c0_i32 : i32, i32
  }
  func.func @transform_1(%arg0: i32) -> (i32, i32) {
    %c0_i32 = arith.constant 0 : i32
    %c0_i32_0 = arith.constant 0 : i32
    %c0_i32_1 = arith.constant 0 : i32
    return %c0_i32, %c0_i32_0 : i32, i32
  }
  func.func @transform_2(%arg0: i32) -> (i32, i32) {
    %c0_i32 = arith.constant 0 : i32
    %c0_i32_0 = arith.constant 0 : i32
    %c0_i32_1 = arith.constant 0 : i32
    return %c0_i32, %c0_i32_0 : i32, i32
  }
  func.func @transform_3(%arg0: i32) -> (i32, i32) {
    %c0_i32 = arith.constant 0 : i32
    %c0_i32_0 = arith.constant 0 : i32
    %c0_i32_1 = arith.constant 0 : i32
    return %c0_i32, %c0_i32_0 : i32, i32
  }
  func.func @transform_4(%arg0: i32) -> (i32, i32) {
    %c0_i32 = arith.constant 0 : i32
    %c0_i32_0 = arith.constant 0 : i32
    %c0_i32_1 = arith.constant 0 : i32
    return %c0_i32, %c0_i32_0 : i32, i32
  }
  func.func @transform_5(%arg0: i32) -> (i32, i32) {
    %c0_i32 = arith.constant 0 : i32
    %c0_i32_0 = arith.constant 0 : i32
    %c0_i32_1 = arith.constant 0 : i32
    return %c0_i32, %c0_i32_0 : i32, i32
  }
  func.func @transform_6(%arg0: i32) -> (i32, i32) {
    %c0_i32 = arith.constant 0 : i32
    %c0_i32_0 = arith.constant 0 : i32
    %c0_i32_1 = arith.constant 0 : i32
    return %c0_i32, %c0_i32_0 : i32, i32
  }
  func.func @transform_7(%arg0: i32) -> (i32, i32) {
    %c0_i32 = arith.constant 0 : i32
    %c0_i32_0 = arith.constant 0 : i32
    return %arg0, %c0_i32 : i32, i32
  }
}

</mosaic_0001>

<llo_original>
// kernel: tpu_custom_call.1
$region0: #{tpu_custom_call.1}
  #allocation0 [shape = 'u32[]', space=smem, size = 0x4, offset = 0x4, fixed_abs, tag = 'smem constant byte address 0x4 - core index']
  #allocation1 [shape = 'u32[144,128]{1,0:T(1,128)}', space=vmem, size = 0x12000, scoped, tag = 'internal scratch']
  %s0 = inlined_call_operand.vmem [shape: f32[16,64], index: 0, kind: input, shape index: {}]
  %s1 = inlined_call_operand.hbm [shape: f32[64,128], index: 1, kind: input, shape index: {}]
  %s2 = inlined_call_operand.vmem [shape: f32[1,128], index: 2, kind: input, shape index: {}]
  %s3 = inlined_call_operand.vmem [shape: f32[128,128], index: 3, kind: input, shape index: {}]
  %s4 = inlined_call_operand.vmem [shape: f32[1,128], index: 4, kind: input, shape index: {}]
  %s5 = inlined_call_operand.vmem [shape: f32[128,8], index: 5, kind: input, shape index: {}]
  %s6 = inlined_call_operand.vmem [shape: f32[1,8], index: 6, kind: input, shape index: {}]
  %s7 = inlined_call_operand.vmem [shape: f32[16,8], index: 7, kind: output, shape index: {}]
  %s8 = sld [smem:[#allocation0]]
  $region42: #{tpu_custom_call.1} parent=0
    _
  %s10 = ssub.s32 1, %s8
  %s11 = scalar_select 0, %s10, %s8
  $region1: #{tpu_custom_call.1} parent=0
    #allocation2 [shape = 'u8[32768]{0}', space=vmem, size = 0x8000, scoped, tag = 'input window, operand 1, single buffered']
    #allocation3 [shape = 's32[1]{0}', space=sflag, size = 0x4, scoped, tag = 'scoped memory for tpu_custom_call.1']
    %12 = vsyncpa [#allocation3], 0
    // Predicated region
    $region2: #{tpu_custom_call.1} parent=1 // pred_check
      _
    $region3: #{tpu_custom_call.1} parent=1 // pred_check_branch
      %14 = sbr.rel (0) target = $region5
    $region4: #{tpu_custom_call.1} parent=1 // pred_region
      _
    $region5: #{tpu_custom_call.1} parent=1 // pred_fallthru
      _
    // Predicated region
    $region6: #{tpu_custom_call.1} parent=1 // pred_check
      _
    $region7: #{tpu_custom_call.1} parent=1 // pred_check_branch
      %16 = sbr.rel (0) target = $region9
    $region8: #{tpu_custom_call.1} parent=1 // pred_region
      %s18 = ssub.s32 1024, 1024
      %19 = vsyncadd [#allocation3], %s18
      %s20 = sshll.u32 [#allocation2], 4
      %s21 = int_to_ptr.vmem [resolvable:$true] %s20
      %26 = dma.hbm_to_vmem [thread:$0]  %s1, 1024, %s21, [#allocation3], 128, 128, 8
    $region9: #{tpu_custom_call.1} parent=1 // pred_fallthru
      _
    // Predicated region
    $region10: #{tpu_custom_call.1} parent=1 // pred_check
      _
    $region11: #{tpu_custom_call.1} parent=1 // pred_check_branch
      %28 = sbr.rel (0) target = $region13
    $region12: #{tpu_custom_call.1} parent=1 // pred_region
      _
    $region13: #{tpu_custom_call.1} parent=1 // pred_fallthru
      _
    // Predicated region
    $region14: #{tpu_custom_call.1} parent=1 // pred_check
      _
    $region15: #{tpu_custom_call.1} parent=1 // pred_check_branch
      %30 = sbr.rel (0) target = $region17
    $region16: #{tpu_custom_call.1} parent=1 // pred_region
      _
    $region17: #{tpu_custom_call.1} parent=1 // pred_fallthru
      _
    // Predicated region
    $region18: #{tpu_custom_call.1} parent=1 // pred_check
      _
    $region19: #{tpu_custom_call.1} parent=1 // pred_check_branch
      %32 = sbr.rel (0) target = $region21
    $region20: #{tpu_custom_call.1} parent=1 // pred_region
      _
    $region21: #{tpu_custom_call.1} parent=1 // pred_fallthru
      _
    // Predicated region
    $region22: #{tpu_custom_call.1} parent=1 // pred_check
      _
    $region23: #{tpu_custom_call.1} parent=1 // pred_check_branch
      %34 = sbr.rel (0) target = $region25
    $region24: #{tpu_custom_call.1} parent=1 // pred_region
      _
    $region25: #{tpu_custom_call.1} parent=1 // pred_fallthru
      _
    // Predicated region
    $region26: #{tpu_custom_call.1} parent=1 // pred_check
      _
    $region27: #{tpu_custom_call.1} parent=1 // pred_check_branch
      %36 = sbr.rel (0) target = $region29
    $region28: #{tpu_custom_call.1} parent=1 // pred_region
      _
    $region29: #{tpu_custom_call.1} parent=1 // pred_fallthru
      _
    // Predicated region
    $region30: #{tpu_custom_call.1} parent=1 // pred_check
      _
    $region31: #{tpu_custom_call.1} parent=1 // pred_check_branch
      %38 = sbr.rel (0) target = $region33
    $region32: #{tpu_custom_call.1} parent=1 // pred_region
      %39 = dma.done [#allocation3], 1024
    $region33: #{tpu_custom_call.1} parent=1 // pred_fallthru
      _
    %v40 = vld [vmem:[%s0] sm:$0xff]
    %v41 = vld [vmem:[%s0 + $0x8] sm:$0xff]
    %v42 = vld [vmem:[#allocation2] sm:$0xff]
    %v43 = vld [vmem:[#allocation2 + $0x8] sm:$0xff]
    %v44 = vld [vmem:[#allocation2 + $0x10] sm:$0xff]
    %v45 = vld [vmem:[#allocation2 + $0x18] sm:$0xff]
    %v46 = vld [vmem:[#allocation2 + $0x20] sm:$0xff]
    %v47 = vld [vmem:[#allocation2 + $0x28] sm:$0xff]
    %v48 = vld [vmem:[#allocation2 + $0x30] sm:$0xff]
    %v49 = vld [vmem:[#allocation2 + $0x38] sm:$0xff]
    %v50 = vld [vmem:[%s2] sm:$0x1]
    %v52 = vlaneseq
    %v53 = vshrl.u32 %v52, 7
    %v54 = vsub.s32 0, %v53
    %v55 = vrot.slane %v50, %v54
    %vm57 = vcmask 523264
    %v59 = vsel %vm57, %v40, 0
    %v62 = vsel %vm57, %v41, 0
    %64 = vmatprep.subr.mxu0 0.0
    %65 = vmatpush1.msra.mxu0 %v42
    %66 = vmatprep.subr.mxu0 0.0
    %67 = vmatpush1.msra.mxu0 %v43
    %68 = vmatprep.subr.mxu0 0.0
    %69 = vmatpush1.msra.mxu0 %v44
    %70 = vmatprep.subr.mxu0 0.0
    %71 = vmatpush1.msra.mxu0 %v45
    %72 = vmatprep.subr.mxu0 0.0
    %73 = vmatpush1.msra.mxu0 %v46
    %74 = vmatprep.subr.mxu0 0.0
    %75 = vmatpush1.msra.mxu0 %v47
    %76 = vmatprep.subr.mxu0 0.0
    %77 = vmatpush1.msra.mxu0 %v48
    %78 = vmatprep.subr.mxu0 0.0
    %79 = vmatpush1.msra.mxu0 %v49
    %80 = vmatprep.subr.mxu0 0.0
    %81 = vmatpush1.msra.mxu0 0.0
    %82 = vmatprep.subr.mxu0 0.0
    %83 = vmatpush1.msra.mxu0 0.0
    %84 = vmatprep.subr.mxu0 0.0
    %85 = vmatpush1.msra.mxu0 0.0
    %86 = vmatprep.subr.mxu0 0.0
    %87 = vmatpush1.msra.mxu0 0.0
    %88 = vmatprep.subr.mxu0 0.0
    %89 = vmatpush1.msra.mxu0 0.0
    %90 = vmatprep.subr.mxu0 0.0
    %91 = vmatpush1.msra.mxu0 0.0
    %92 = vmatprep.subr.mxu0 0.0
    %93 = vmatpush1.msra.mxu0 0.0
    %94 = vmatprep.subr.mxu0 0.0
    %95 = vmatpush1.msra.mxu0 0.0
    %96 = vmatprep.subr.mxu0 0.0
    %97 = vmatpush1.msra.mxu0 0.0
    %98 = vmatprep.subr.mxu0 0.0
    %99 = vmatpush1.msra.mxu0 0.0
    %100 = vmatprep.subr.mxu0 0.0
    %101 = vmatpush1.msra.mxu0 0.0
    %102 = vmatprep.subr.mxu0 0.0
    %103 = vmatpush1.msra.mxu0 0.0
    %104 = vmatprep.subr.mxu0 0.0
    %105 = vmatpush1.msra.mxu0 0.0
    %106 = vmatprep.subr.mxu0 0.0
    %107 = vmatpush1.msra.mxu0 0.0
    %108 = vmatprep.subr.mxu0 0.0
    %109 = vmatpush1.msra.mxu0 0.0
    %110 = vmatprep.subr.mxu0 0.0
    %111 = vmatpush1.msra.mxu0 0.0
    %112 = vmatprep.subr.mxu0 0.0
    %113 = vmatpush1.msra.mxu0 0.0
    %114 = vmatprep.subr.mxu0 0.0
    %115 = vmatpush1.msra.mxu0 0.0
    %116 = vmatprep.subr.mxu0 0.0
    %117 = vmatpush1.msra.mxu0 0.0
    %118 = vmatprep.subr.mxu0 0.0
    %119 = vmatpush1.msra.mxu0 0.0
    %120 = vmatprep.subr.mxu0 0.0
    %121 = vmatpush1.msra.mxu0 0.0
    %122 = vmatprep.subr.mxu0 0.0
    %123 = vmatpush1.msra.mxu0 0.0
    %124 = vmatprep.subr.mxu0 0.0
    %125 = vmatpush1.msra.mxu0 0.0
    %126 = vmatprep.subr.mxu0 0.0
    %127 = vmatpush1.msra.mxu0 0.0
    %128 = vmatprep.mubr.f32.mxu0 0.0
    %129 = vmatmul.mubr.f32.gmra.mrb[0].mxu0 %v59
    %v130 = vpop.f32.mrb[0].mxu0
    %v131 = vadd.f32 %v55, %v130
    %v132 = vpop.f32.mrb[0].mxu0
    %133 = vmatprep.mubr.f32.mxu0 0.0
    %134 = vmatmul.mubr.f32.gmra.mrb[0].mxu0 %v62
    %v135 = vpop.f32.mrb[0].mxu0
    %v136 = vadd.f32 %v55, %v135
    %v137 = vpop.f32.mrb[0].mxu0
    %138 = vdwg.mxu0
    %v139 = vmax.f32 %v131, 0.0
    %v140 = vmax.f32 %v136, 0.0
    %v141 = vld [vmem:[%s3] sm:$0xff]
    %v142 = vld [vmem:[%s3 + $0x8] sm:$0xff]
    %v143 = vld [vmem:[%s3 + $0x10] sm:$0xff]
    %v144 = vld [vmem:[%s3 + $0x18] sm:$0xff]
    %v145 = vld [vmem:[%s3 + $0x20] sm:$0xff]
    %v146 = vld [vmem:[%s3 + $0x28] sm:$0xff]
    %v147 = vld [vmem:[%s3 + $0x30] sm:$0xff]
    %v148 = vld [vmem:[%s3 + $0x38] sm:$0xff]
    %v149 = vld [vmem:[%s3 + $0x40] sm:$0xff]
    %v150 = vld [vmem:[%s3 + $0x48] sm:$0xff]
    %v151 = vld [vmem:[%s3 + $0x50] sm:$0xff]
    %v152 = vld [vmem:[%s3 + $0x58] sm:$0xff]
    %v153 = vld [vmem:[%s3 + $0x60] sm:$0xff]
    %v154 = vld [vmem:[%s3 + $0x68] sm:$0xff]
    %v155 = vld [vmem:[%s3 + $0x70] sm:$0xff]
    %v156 = vld [vmem:[%s3 + $0x78] sm:$0xff]
    %v157 = vld [vmem:[%s4] sm:$0x1]
    %v159 = vlaneseq
    %v160 = vshrl.u32 %v159, 7
    %v161 = vsub.s32 0, %v160
    %v162 = vrot.slane %v157, %v161
    %164 = vmatprep.subr.mxu0 0.0
    %165 = vmatpush1.msra.mxu0 %v141
    %166 = vmatprep.subr.mxu0 0.0
    %167 = vmatpush1.msra.mxu0 %v142
    %168 = vmatprep.subr.mxu0 0.0
    %169 = vmatpush1.msra.mxu0 %v143
    %170 = vmatprep.subr.mxu0 0.0
    %171 = vmatpush1.msra.mxu0 %v144
    %172 = vmatprep.subr.mxu0 0.0
    %173 = vmatpush1.msra.mxu0 %v145
    %174 = vmatprep.subr.mxu0 0.0
    %175 = vmatpush1.msra.mxu0 %v146
    %176 = vmatprep.subr.mxu0 0.0
    %177 = vmatpush1.msra.mxu0 %v147
    %178 = vmatprep.subr.mxu0 0.0
    %179 = vmatpush1.msra.mxu0 %v148
    %180 = vmatprep.subr.mxu0 0.0
    %181 = vmatpush1.msra.mxu0 %v149
    %182 = vmatprep.subr.mxu0 0.0
    %183 = vmatpush1.msra.mxu0 %v150
    %184 = vmatprep.subr.mxu0 0.0
    %185 = vmatpush1.msra.mxu0 %v151
    %186 = vmatprep.subr.mxu0 0.0
    %187 = vmatpush1.msra.mxu0 %v152
    %188 = vmatprep.subr.mxu0 0.0
    %189 = vmatpush1.msra.mxu0 %v153
    %190 = vmatprep.subr.mxu0 0.0
    %191 = vmatpush1.msra.mxu0 %v154
    %192 = vmatprep.subr.mxu0 0.0
    %193 = vmatpush1.msra.mxu0 %v155
    %194 = vmatprep.subr.mxu0 0.0
    %195 = vmatpush1.msra.mxu0 %v156
    %196 = vmatprep.subr.mxu0 0.0
    %197 = vmatpush1.msra.mxu0 0.0
    %198 = vmatprep.subr.mxu0 0.0
    %199 = vmatpush1.msra.mxu0 0.0
    %200 = vmatprep.subr.mxu0 0.0
    %201 = vmatpush1.msra.mxu0 0.0
    %202 = vmatprep.subr.mxu0 0.0
    %203 = vmatpush1.msra.mxu0 0.0
    %204 = vmatprep.subr.mxu0 0.0
    %205 = vmatpush1.msra.mxu0 0.0
    %206 = vmatprep.subr.mxu0 0.0
    %207 = vmatpush1.msra.mxu0 0.0
    %208 = vmatprep.subr.mxu0 0.0
    %209 = vmatpush1.msra.mxu0 0.0
    %210 = vmatprep.subr.mxu0 0.0
    %211 = vmatpush1.msra.mxu0 0.0
    %212 = vmatprep.subr.mxu0 0.0
    %213 = vmatpush1.msra.mxu0 0.0
    %214 = vmatprep.subr.mxu0 0.0
    %215 = vmatpush1.msra.mxu0 0.0
    %216 = vmatprep.subr.mxu0 0.0
    %217 = vmatpush1.msra.mxu0 0.0
    %218 = vmatprep.subr.mxu0 0.0
    %219 = vmatpush1.msra.mxu0 0.0
    %220 = vmatprep.subr.mxu0 0.0
    %221 = vmatpush1.msra.mxu0 0.0
    %222 = vmatprep.subr.mxu0 0.0
    %223 = vmatpush1.msra.mxu0 0.0
    %224 = vmatprep.subr.mxu0 0.0
    %225 = vmatpush1.msra.mxu0 0.0
    %226 = vmatprep.subr.mxu0 0.0
    %227 = vmatpush1.msra.mxu0 0.0
    %228 = vmatprep.mubr.f32.mxu0 0.0
    %229 = vmatmul.mubr.f32.gmra.mrb[0].mxu0 %v139
    %v230 = vpop.f32.mrb[0].mxu0
    %v231 = vadd.f32 %v162, %v230
    %v232 = vpop.f32.mrb[0].mxu0
    %233 = vmatprep.mubr.f32.mxu0 0.0
    %234 = vmatmul.mubr.f32.gmra.mrb[0].mxu0 %v140
    %v235 = vpop.f32.mrb[0].mxu0
    %v236 = vadd.f32 %v162, %v235
    %v237 = vpop.f32.mrb[0].mxu0
    %238 = vdwg.mxu0
    %v239 = vmax.f32 %v231, 0.0
    %v240 = vmax.f32 %v236, 0.0
    %v241 = vld [vmem:[%s5] sm:$0xff]
    %v242 = vld [vmem:[%s5 + $0x8] sm:$0xff]
    %v243 = vld [vmem:[%s5 + $0x10] sm:$0xff]
    %v244 = vld [vmem:[%s5 + $0x18] sm:$0xff]
    %v245 = vld [vmem:[%s5 + $0x20] sm:$0xff]
    %v246 = vld [vmem:[%s5 + $0x28] sm:$0xff]
    %v247 = vld [vmem:[%s5 + $0x30] sm:$0xff]
    %v248 = vld [vmem:[%s5 + $0x38] sm:$0xff]
    %v249 = vld [vmem:[%s5 + $0x40] sm:$0xff]
    %v250 = vld [vmem:[%s5 + $0x48] sm:$0xff]
    %v251 = vld [vmem:[%s5 + $0x50] sm:$0xff]
    %v252 = vld [vmem:[%s5 + $0x58] sm:$0xff]
    %v253 = vld [vmem:[%s5 + $0x60] sm:$0xff]
    %v254 = vld [vmem:[%s5 + $0x68] sm:$0xff]
    %v255 = vld [vmem:[%s5 + $0x70] sm:$0xff]
    %v256 = vld [vmem:[%s5 + $0x78] sm:$0xff]
    %v257 = vld [vmem:[%s6] sm:$0x1]
    %v259 = vlaneseq
    %v260 = vshrl.u32 %v259, 7
    %v261 = vsub.s32 0, %v260
    %v262 = vrot.slane %v257, %v261
    %264 = vmatprep.subr.mxu0 0.0
    %265 = vmatpush1.msra.mxu0 %v241
    %266 = vmatprep.subr.mxu0 0.0
    %267 = vmatpush1.msra.mxu0 %v242
    %268 = vmatprep.subr.mxu0 0.0
    %269 = vmatpush1.msra.mxu0 %v243
    %270 = vmatprep.subr.mxu0 0.0
    %271 = vmatpush1.msra.mxu0 %v244
    %272 = vmatprep.subr.mxu0 0.0
    %273 = vmatpush1.msra.mxu0 %v245
    %274 = vmatprep.subr.mxu0 0.0
    %275 = vmatpush1.msra.mxu0 %v246
    %276 = vmatprep.subr.mxu0 0.0
    %277 = vmatpush1.msra.mxu0 %v247
    %278 = vmatprep.subr.mxu0 0.0
    %279 = vmatpush1.msra.mxu0 %v248
    %280 = vmatprep.subr.mxu0 0.0
    %281 = vmatpush1.msra.mxu0 %v249
    %282 = vmatprep.subr.mxu0 0.0
    %283 = vmatpush1.msra.mxu0 %v250
    %284 = vmatprep.subr.mxu0 0.0
    %285 = vmatpush1.msra.mxu0 %v251
    %286 = vmatprep.subr.mxu0 0.0
    %287 = vmatpush1.msra.mxu0 %v252
    %288 = vmatprep.subr.mxu0 0.0
    %289 = vmatpush1.msra.mxu0 %v253
    %290 = vmatprep.subr.mxu0 0.0
    %291 = vmatpush1.msra.mxu0 %v254
    %292 = vmatprep.subr.mxu0 0.0
    %293 = vmatpush1.msra.mxu0 %v255
    %294 = vmatprep.subr.mxu0 0.0
    %295 = vmatpush1.msra.mxu0 %v256
    %296 = vmatprep.subr.mxu0 0.0
    %297 = vmatpush1.msra.mxu0 0.0
    %298 = vmatprep.subr.mxu0 0.0
    %299 = vmatpush1.msra.mxu0 0.0
    %300 = vmatprep.subr.mxu0 0.0
    %301 = vmatpush1.msra.mxu0 0.0
    %302 = vmatprep.subr.mxu0 0.0
    %303 = vmatpush1.msra.mxu0 0.0
    %304 = vmatprep.subr.mxu0 0.0
    %305 = vmatpush1.msra.mxu0 0.0
    %306 = vmatprep.subr.mxu0 0.0
    %307 = vmatpush1.msra.mxu0 0.0
    %308 = vmatprep.subr.mxu0 0.0
    %309 = vmatpush1.msra.mxu0 0.0
    %310 = vmatprep.subr.mxu0 0.0
    %311 = vmatpush1.msra.mxu0 0.0
    %312 = vmatprep.subr.mxu0 0.0
    %313 = vmatpush1.msra.mxu0 0.0
    %314 = vmatprep.subr.mxu0 0.0
    %315 = vmatpush1.msra.mxu0 0.0
    %316 = vmatprep.subr.mxu0 0.0
    %317 = vmatpush1.msra.mxu0 0.0
    %318 = vmatprep.subr.mxu0 0.0
    %319 = vmatpush1.msra.mxu0 0.0
    %320 = vmatprep.subr.mxu0 0.0
    %321 = vmatpush1.msra.mxu0 0.0
    %322 = vmatprep.subr.mxu0 0.0
    %323 = vmatpush1.msra.mxu0 0.0
    %324 = vmatprep.subr.mxu0 0.0
    %325 = vmatpush1.msra.mxu0 0.0
    %326 = vmatprep.subr.mxu0 0.0
    %327 = vmatpush1.msra.mxu0 0.0
    %328 = vmatprep.mubr.f32.mxu0 0.0
    %329 = vmatmul.mubr.f32.gmra.mrb[0].mxu0 %v239
    %v330 = vpop.f32.mrb[0].mxu0
    %v331 = vadd.f32 %v262, %v330
    %v332 = vpop.f32.mrb[0].mxu0
    %333 = vmatprep.mubr.f32.mxu0 0.0
    %334 = vmatmul.mubr.f32.gmra.mrb[0].mxu0 %v240
    %v335 = vpop.f32.mrb[0].mxu0
    %v336 = vadd.f32 %v262, %v335
    %v337 = vpop.f32.mrb[0].mxu0
    %338 = vdwg.mxu0
    %vm339 = vcmask 64512
    %340 = vst.msk [vmem:[%s7] sm:$0xff] %vm339, %v331
    %341 = vst.msk [vmem:[%s7 + $0x8] sm:$0xff] %vm339, %v336
    // Predicated region
    $region34: #{tpu_custom_call.1} parent=1 // pred_check
      _
    $region35: #{tpu_custom_call.1} parent=1 // pred_check_branch
      %343 = sbr.rel (0) target = $region37
    $region36: #{tpu_custom_call.1} parent=1 // pred_region
      _
    $region37: #{tpu_custom_call.1} parent=1 // pred_fallthru
      _
    // Predicated region
    $region38: #{tpu_custom_call.1} parent=1 // pred_check
      _
    $region39: #{tpu_custom_call.1} parent=1 // pred_check_branch
      %345 = sbr.rel (0) target = $region41
    $region40: #{tpu_custom_call.1} parent=1 // pred_region
      _
    $region41: #{tpu_custom_call.1} parent=1 // pred_fallthru
      _
    %346 = vsyncpa [#allocation3], 1

</llo_original>
